<compile_context>
chip_gen: v5e
topology: v5e:2x2
jax: 0.10.0
libtpu: 0.0.40
codegen_flags: <defaults>
</compile_context>

<pallas_src>
import math

import jax
import jax.numpy as jnp
from jax.experimental import pallas as pl
from jax.experimental.pallas import tpu as pltpu


# ------------------------------- Pallas kernel ------------------------------ #

def generator_kernel(x_ref, w_ref, b_ref, o_ref, acc_ref):
    """Fused Linear + log_softmax.

    x_ref:   (tm, tk)      row tile of the flattened activations
    w_ref:   (tk, V)       K-slice of the (pre-transposed) weight
    b_ref:   (1,  V)       bias
    o_ref:   (tm, V)       output log-probabilities (written on last K step)
    acc_ref: (tm, V) f32   VMEM accumulator, lives across the K grid axis
    """
    k = pl.program_id(1)

    @pl.when(k == 0)
    def _init():
        acc_ref[...] = jnp.zeros_like(acc_ref)

    acc_ref[...] += jnp.dot(x_ref[...], w_ref[...],
                            preferred_element_type=jnp.float32)

    @pl.when(k == pl.num_programs(1) - 1)
    def _finalize():
        z = acc_ref[...] + b_ref[...].astype(jnp.float32)          # logits (tm, V)
        m = jnp.max(z, axis=-1, keepdims=True)
        lse = m + jnp.log(jnp.sum(jnp.exp(z - m), axis=-1, keepdims=True))
        o_ref[...] = (z - lse).astype(o_ref.dtype)


# ------------------------------ kernel wrapper ------------------------------ #

def generator_forward(x, w, b, *, block_m=128, block_k=512):
    """log_softmax(x @ w + b, axis=-1).

    x: (..., d_model)
    w: (d_model, vocab)   -- pre-transposed relative to torch's nn.Linear.weight
    b: (vocab,)
    """
    *lead, D = x.shape
    V = w.shape[1]
    M = int(math.prod(lead)) if lead else 1
    x2 = x.reshape(M, D)

    # Tile the row axis (sublane-aligned); fall back to the full extent when it
    # does not divide evenly (toy shapes).  Same for the d_model reduction axis.
    tm = block_m if (M % block_m == 0) else M
    tk = block_k if (D % block_k == 0) else D
    grid = (M // tm, D // tk)

    out = pl.pallas_call(
        generator_kernel,
        out_shape=jax.ShapeDtypeStruct((M, V), x.dtype),
        grid_spec=pltpu.PrefetchScalarGridSpec(
            num_scalar_prefetch=0,
            grid=grid,
            in_specs=[
                pl.BlockSpec((tm, tk), lambda i, k: (i, k)),   # activations
                pl.BlockSpec((tk, V), lambda i, k: (k, 0)),    # weight K-slice
                pl.BlockSpec((1, V), lambda i, k: (0, 0)),     # bias
            ],
            out_specs=pl.BlockSpec((tm, V), lambda i, k: (i, 0)),
            scratch_shapes=[pltpu.VMEM((tm, V), jnp.float32)],
        ),
        compiler_params=pltpu.CompilerParams(
            dimension_semantics=("parallel", "arbitrary")),
    )(x2, w, b.reshape(1, V))

    return out.reshape(*lead, V)


# --------------------------- pure-JAX reference ----------------------------- #

def _ref_generator(x, w, b):
    return jax.nn.log_softmax(x @ w + b, axis=-1)


# ----------------------------------- main ----------------------------------- #

if __name__ == "__main__":
    root = jax.random.PRNGKey(0)
    kx, kw, kb, kx2, kw2, kb2 = jax.random.split(root, 6)

    # Config 1: toy shapes implied by the module (B, S, d_model) -> vocab.
    B, S, D_MODEL, VOCAB = 2, 8, 32, 128
    x = jax.random.normal(kx, (B, S, D_MODEL), jnp.float32)
    w = 0.02 * jax.random.normal(kw, (D_MODEL, VOCAB), jnp.float32)
    b = 0.01 * jax.random.normal(kb, (VOCAB,), jnp.float32)

    out = generator_forward(x, w, b, block_m=8)        # grid = (2, 1)
    out = jax.block_until_ready(out)
    ref = _ref_generator(x, w, b)
    assert out.shape == (B, S, VOCAB)
    assert jnp.allclose(out, ref, rtol=1e-4, atol=1e-4)

    # Config 2: exercises the multi-step K (d_model) reduction, grid = (2, 2).
    B2, S2, D2, V2 = 2, 8, 256, 256
    x2 = jax.random.normal(kx2, (B2, S2, D2), jnp.float32)
    w2 = 0.02 * jax.random.normal(kw2, (D2, V2), jnp.float32)
    b2 = 0.01 * jax.random.normal(kb2, (V2,), jnp.float32)

    out2 = generator_forward(x2, w2, b2, block_m=8, block_k=128)
    out2 = jax.block_until_ready(out2)
    ref2 = _ref_generator(x2, w2, b2)
    assert out2.shape == (B2, S2, V2)
    assert jnp.allclose(out2, ref2, rtol=1e-4, atol=1e-4)

    print("KERNEL_OK")
</pallas_src>

<mosaic_0001>
module attributes {stable_mosaic.version = 11 : i64} {
  func.func @generator_kernel(%arg0: i32, %arg1: i32, %arg2: memref<8x32xf32, #tpu.memory_space<vmem>>, %arg3: memref<32x128xf32, #tpu.memory_space<vmem>>, %arg4: memref<1x128xf32, #tpu.memory_space<vmem>>, %arg5: memref<8x128xf32, #tpu.memory_space<vmem>>, %arg6: memref<8x128xf32, #tpu.memory_space<vmem>>) attributes {dimension_semantics = [#tpu.dimension_semantics<parallel>, #tpu.dimension_semantics<arbitrary>], iteration_bounds = array<i64: 2, 1>, scalar_prefetch = 0 : i64, scratch_operands = 1 : i64, tpu.core_type = #tpu.core_type<tc>, window_params = [{transform_indices = @transform_0, window_bounds = array<i64: 8, 32>}, {transform_indices = @transform_1, window_bounds = array<i64: 32, 128>}, {pipeline_mode = #tpu.pipeline_mode<synchronous>, transform_indices = @transform_2, window_bounds = array<i64: 1, 128>}, {transform_indices = @transform_3, window_bounds = array<i64: 8, 128>}]} {
    %c0_i32 = arith.constant 0 : i32
    %0 = arith.cmpi eq, %arg1, %c0_i32 : i32
    %1 = arith.extui %0 : i1 to i32
    %c0_i32_0 = arith.constant 0 : i32
    %2 = arith.cmpi ne, %1, %c0_i32_0 : i32
    scf.if %2 {
      %cst_10 = arith.constant 0.000000e+00 : f32
      %12 = vector.broadcast %cst_10 : f32 to vector<8x128xf32>
      %c0_11 = arith.constant 0 : index
      %c0_12 = arith.constant 0 : index
      %13 = vector.load %arg6[%c0_11, %c0_12] : memref<8x128xf32, #tpu.memory_space<vmem>>, vector<8x128xf32>
      tpu.vector_store %arg6[%c0_11, %c0_12], %12 {strides = array<i32>} : memref<8x128xf32, #tpu.memory_space<vmem>>, vector<8x128xf32>,
    } else {
    }
    %c0 = arith.constant 0 : index
    %c0_1 = arith.constant 0 : index
    %3 = vector.load %arg6[%c0, %c0_1] : memref<8x128xf32, #tpu.memory_space<vmem>>, vector<8x128xf32>
    %c0_2 = arith.constant 0 : index
    %c0_3 = arith.constant 0 : index
    %4 = vector.load %arg2[%c0_2, %c0_3] : memref<8x32xf32, #tpu.memory_space<vmem>>, vector<8x32xf32>
    %c0_4 = arith.constant 0 : index
    %c0_5 = arith.constant 0 : index
    %5 = vector.load %arg3[%c0_4, %c0_5] : memref<32x128xf32, #tpu.memory_space<vmem>>, vector<32x128xf32>
    %cst = arith.constant dense<0.000000e+00> : vector<8x128xf32>
    %6 = tpu.matmul %4, %5, %cst {dimension_numbers = #tpu.dot_dimension_numbers<[1], [0], [0], [1], [0, 0, 1, 1], [], []>} : vector<8x32xf32>, vector<32x128xf32>, vector<8x128xf32> -> vector<8x128xf32>
    %7 = arith.addf %3, %6 : vector<8x128xf32>
    %c0_6 = arith.constant 0 : index
    %c0_7 = arith.constant 0 : index
    %8 = vector.load %arg6[%c0_6, %c0_7] : memref<8x128xf32, #tpu.memory_space<vmem>>, vector<8x128xf32>
    tpu.vector_store %arg6[%c0_6, %c0_7], %7 {strides = array<i32>} : memref<8x128xf32, #tpu.memory_space<vmem>>, vector<8x128xf32>,
    %c0_i32_8 = arith.constant 0 : i32
    %9 = arith.cmpi eq, %arg1, %c0_i32_8 : i32
    %10 = arith.extui %9 : i1 to i32
    %c0_i32_9 = arith.constant 0 : i32
    %11 = arith.cmpi ne, %10, %c0_i32_9 : i32
    scf.if %11 {
      %c0_10 = arith.constant 0 : index
      %c0_11 = arith.constant 0 : index
      %12 = vector.load %arg6[%c0_10, %c0_11] : memref<8x128xf32, #tpu.memory_space<vmem>>, vector<8x128xf32>
      %c0_12 = arith.constant 0 : index
      %c0_13 = arith.constant 0 : index
      %13 = vector.load %arg4[%c0_12, %c0_13] : memref<1x128xf32, #tpu.memory_space<vmem>>, vector<1x128xf32>
      %14 = vector.broadcast %13 : vector<1x128xf32> to vector<8x128xf32>
      %15 = arith.addf %12, %14 : vector<8x128xf32>
      %cst_14 = arith.constant dense<0xFF800000> : vector<8xf32>
      %16 = vector.multi_reduction <maximumf>, %15, %cst_14 [1] : vector<8x128xf32> to vector<8xf32>
      %17 = vector.shape_cast %16 : vector<8xf32> to vector<8x1xf32>
      %18 = vector.broadcast %17 : vector<8x1xf32> to vector<8x128xf32>
      %19 = arith.subf %15, %18 : vector<8x128xf32>
      %20 = math.exp %19 : vector<8x128xf32>
      %cst_15 = arith.constant dense<0.000000e+00> : vector<8xf32>
      %21 = vector.multi_reduction <add>, %20, %cst_15 [1] : vector<8x128xf32> to vector<8xf32>
      %22 = vector.shape_cast %21 : vector<8xf32> to vector<8x1xf32>
      %23 = math.log %22 : vector<8x1xf32>
      %24 = arith.addf %17, %23 : vector<8x1xf32>
      %25 = vector.broadcast %24 : vector<8x1xf32> to vector<8x128xf32>
      %26 = arith.subf %15, %25 : vector<8x128xf32>
      %c0_16 = arith.constant 0 : index
      %c0_17 = arith.constant 0 : index
      %27 = vector.load %arg5[%c0_16, %c0_17] : memref<8x128xf32, #tpu.memory_space<vmem>>, vector<8x128xf32>
      tpu.vector_store %arg5[%c0_16, %c0_17], %26 {strides = array<i32>} : memref<8x128xf32, #tpu.memory_space<vmem>>, vector<8x128xf32>,
    } else {
    }
    return
  }
  func.func @transform_0(%arg0: i32, %arg1: i32) -> (i32, i32) {
    %c0_i32 = arith.constant 0 : i32
    return %arg0, %arg1 : i32, i32
  }
  func.func @transform_1(%arg0: i32, %arg1: i32) -> (i32, i32) {
    %c0_i32 = arith.constant 0 : i32
    %c0_i32_0 = arith.constant 0 : i32
    return %arg1, %c0_i32 : i32, i32
  }
  func.func @transform_2(%arg0: i32, %arg1: i32) -> (i32, i32) {
    %c0_i32 = arith.constant 0 : i32
    %c0_i32_0 = arith.constant 0 : i32
    %c0_i32_1 = arith.constant 0 : i32
    return %c0_i32, %c0_i32_0 : i32, i32
  }
  func.func @transform_3(%arg0: i32, %arg1: i32) -> (i32, i32) {
    %c0_i32 = arith.constant 0 : i32
    %c0_i32_0 = arith.constant 0 : i32
    return %arg0, %c0_i32 : i32, i32
  }
}

</mosaic_0001>

<llo_original>
// kernel: tpu_custom_call.1
$region0: #{tpu_custom_call.1}
  #allocation0 [shape = 'u32[]', space=smem, size = 0x4, offset = 0x4, fixed_abs, tag = 'smem constant byte address 0x4 - core index']
  #allocation1 [shape = 'u32[72,128]{1,0:T(1,128)}', space=vmem, size = 0x9000, scoped, tag = 'internal scratch']
  #allocation2 [shape = 'f32[8,128]{1,0:T(8,128)}', space=vmem, size = 0x1000, scoped, tag = 'scratch operand']
  %s0 = inlined_call_operand.hbm [shape: f32[16,32], index: 0, kind: input, shape index: {}]
  %s1 = inlined_call_operand.hbm [shape: f32[32,128], index: 1, kind: input, shape index: {}]
  %s2 = inlined_call_operand.vmem [shape: f32[1,128], index: 2, kind: input, shape index: {}]
  %s3 = inlined_call_operand.hbm [shape: f32[16,128], index: 3, kind: output, shape index: {}]
  %s4 = sld [smem:[#allocation0]]
  $region61: #{tpu_custom_call.1} parent=0
    _
  %s6 = ssub.s32 1, %s4
  %s7 = scalar_select 0, %s6, %s4
  $region1: #{tpu_custom_call.1} parent=0
    #allocation3 [shape = 'u8[8192]{0}', space=vmem, size = 0x2000, scoped, tag = 'input window, operand 0']
    #allocation4 [shape = 's32[2]{0}', space=sflag, size = 0x8, scoped, tag = 'scoped memory for tpu_custom_call.1']
    #allocation5 [shape = 's32[2]{0}', space=sflag, size = 0x8, scoped, tag = 'scoped memory for tpu_custom_call.1']
    #allocation6 [shape = 'u8[16384]{0}', space=vmem, size = 0x4000, scoped, tag = 'input window, operand 1, single buffered']
    #allocation7 [shape = 's32[1]{0}', space=sflag, size = 0x4, scoped, tag = 'scoped memory for tpu_custom_call.1']
    #allocation8 [shape = 'u8[8192]{0}', space=vmem, size = 0x2000, scoped, tag = 'output window, operand 0']
    %8 = vsyncpa [#allocation4], 0
    %s9 = scalar_lea.sflag [#allocation4], 1
    %10 = vsyncpa %s9, 0
    %11 = vsyncpa [#allocation7], 0
    %12 = vsyncpa [#allocation5], 0
    %s13 = scalar_lea.sflag [#allocation5], 1
    %14 = vsyncpa %s13, 0
    loop: start=0, step=1, limit=4
    $region2: #{tpu_custom_call.1} parent=1 // loop_pre_header
      _
    $region3: #{tpu_custom_call.1} parent=1 // loop_header
      %s16 = sphi 0, %s20
      %p17 = scmp.ge.s32.totalorder %s16, 4
      %s23 = sphi 0, %s35
      %s24 = sphi 0, %s31
      %s25 = sphi 0, %s23
      %s26 = sphi 0, %s24
      %s27 = sphi 0, %s25
      %s28 = sphi 0, %s26
      %s40 = sphi 0, %s42
      %s43 = sphi 0, %s40
      %s44 = sphi 0, %s43
      %s60 = sphi 0, %s44
      %s66 = sphi 0, %s68
      %s69 = sphi 0, %s66
      %s70 = sphi 0, %s69
      %s86 = sphi 0, %s70
      %s90 = sphi 0, %s90
      %s92 = sphi 0, %s90
      %s93 = sphi 0, %s92
      %s107 = sphi 0, %s93
      %s113 = sphi 0, %s115
      %s116 = sphi 0, %s113
      %s117 = sphi 0, %s116
      %s133 = sphi 0, %s117
    $region4: #{tpu_custom_call.1} parent=1 // loop_header_branch
      %19 = sbr.rel (%p17) target = $region8
    $region5: #{tpu_custom_call.1} parent=1 // loop_body
      %s21 = ssub.s32 %s16, 1
      %s22 = ssub.s32 %s16, 2
      %s29 = sadd.s32 1, %s24
      %p30 = scmp.ge.s32.totalorder %s29, 1
      %s31 = scalar_select %p30, 0, %s29
      %s32 = sadd.s32 1, %s23
      %s33 = scalar_select %p30, %s32, %s23
      %p34 = scmp.ge.s32.totalorder %s33, 2
      %s35 = scalar_select %p34, 0, %s33
      %s36 = ssub.s32 %s23, %s35
      %s37 = ssub.s32 %s24, %s31
      %s38 = sor.u32 %s36, %s37
      %p39 = scmp.eq.s32.totalorder %s38, 0
      %s41 = sadd.s32 %s40, 1
      %s42 = scalar_select %p39, %s40, %s41
      %p45 = pneg %p39
      %p46 = scmp.eq.s32.totalorder %s16, 1
      %p47 = por %p45, %p46
      %p48 = scmp.ne.s32.totalorder %s40, %s43
      %p49 = scmp.eq.s32.totalorder %s16, 0
      %p50 = por %p48, %p49
      %p51 = scmp.ne.s32.totalorder %s40, %s43
      %p52 = scmp.eq.s32.totalorder %s21, 1
      %p53 = por %p51, %p52
      %p54 = scmp.ne.s32.totalorder %s43, %s44
      %p55 = scmp.eq.s32.totalorder %s21, 0
      %p56 = por %p54, %p55
      %p57 = scmp.ne.s32.totalorder %s43, %s44
      %p58 = scmp.eq.s32.totalorder %s22, 1
      %p59 = por %p57, %p58
      %p61 = scmp.ne.s32.totalorder %s44, %s60
      %p62 = scmp.eq.s32.totalorder %s22, 0
      %p63 = por %p61, %p62
      %s64 = ssub.s32 %s24, %s31
      %p65 = scmp.eq.s32.totalorder %s64, 0
      %s67 = sadd.s32 %s66, 1
      %s68 = scalar_select %p65, %s66, %s67
      %p71 = pneg %p65
      %p72 = scmp.eq.s32.totalorder %s16, 1
      %p73 = por %p71, %p72
      %p74 = scmp.ne.s32.totalorder %s66, %s69
      %p75 = scmp.eq.s32.totalorder %s16, 0
      %p76 = por %p74, %p75
      %p77 = scmp.ne.s32.totalorder %s66, %s69
      %p78 = scmp.eq.s32.totalorder %s21, 1
      %p79 = por %p77, %p78
      %p80 = scmp.ne.s32.totalorder %s69, %s70
      %p81 = scmp.eq.s32.totalorder %s21, 0
      %p82 = por %p80, %p81
      %p83 = scmp.ne.s32.totalorder %s69, %s70
      %p84 = scmp.eq.s32.totalorder %s22, 1
      %p85 = por %p83, %p84
      %p87 = scmp.ne.s32.totalorder %s70, %s86
      %p88 = scmp.eq.s32.totalorder %s22, 0
      %p89 = por %p87, %p88
      %s91 = sadd.s32 %s90, 1
      %p94 = scmp.eq.s32.totalorder %s16, 1
      %p95 = scmp.ne.s32.totalorder %s90, %s92
      %p96 = scmp.eq.s32.totalorder %s16, 0
      %p97 = por %p95, %p96
      %p98 = scmp.ne.s32.totalorder %s90, %s92
      %p99 = scmp.eq.s32.totalorder %s21, 1
      %p100 = por %p98, %p99
      %p101 = scmp.ne.s32.totalorder %s92, %s93
      %p102 = scmp.eq.s32.totalorder %s21, 0
      %p103 = por %p101, %p102
      %p104 = scmp.ne.s32.totalorder %s92, %s93
      %p105 = scmp.eq.s32.totalorder %s22, 1
      %p106 = por %p104, %p105
      %p108 = scmp.ne.s32.totalorder %s93, %s107
      %p109 = scmp.eq.s32.totalorder %s22, 0
      %p110 = por %p108, %p109
      %s111 = ssub.s32 %s23, %s35
      %p112 = scmp.eq.s32.totalorder %s111, 0
      %s114 = sadd.s32 %s113, 1
      %s115 = scalar_select %p112, %s113, %s114
      %p118 = pneg %p112
      %p119 = scmp.eq.s32.totalorder %s16, 1
      %p120 = por %p118, %p119
      %p121 = scmp.ne.s32.totalorder %s113, %s116
      %p122 = scmp.eq.s32.totalorder %s16, 0
      %p123 = por %p121, %p122
      %p124 = scmp.ne.s32.totalorder %s113, %s116
      %p125 = scmp.eq.s32.totalorder %s21, 1
      %p126 = por %p124, %p125
      %p127 = scmp.ne.s32.totalorder %s116, %s117
      %p128 = scmp.eq.s32.totalorder %s21, 0
      %p129 = por %p127, %p128
      %p130 = scmp.ne.s32.totalorder %s116, %s117
      %p131 = scmp.eq.s32.totalorder %s22, 1
      %p132 = por %p130, %p131
      %p134 = scmp.ne.s32.totalorder %s117, %s133
      %p135 = scmp.eq.s32.totalorder %s22, 0
      %p136 = por %p134, %p135
      %p137 = scmp.le.s32.totalorder 1, %s16
      %p138 = scmp.lt.s32.totalorder %s16, 3
      %p139 = pnand %p137, %p138
      %p140 = pneg %p139
      // Predicated region
      $region9: #{tpu_custom_call.1} parent=5 // pred_check
        _
      $region10: #{tpu_custom_call.1} parent=5 // pred_check_branch
        %142 = sbr.rel (%p139) target = $region12
      $region11: #{tpu_custom_call.1} parent=5 // pred_region
        %s143 = ssub.s32 %s16, 1
        // Predicated region
        $region13: #{tpu_custom_call.1} parent=11 // pred_check
          %p144 = pneg %p82
        $region14: #{tpu_custom_call.1} parent=11 // pred_check_branch
          %146 = sbr.rel (%p144) target = $region16
        $region15: #{tpu_custom_call.1} parent=11 // pred_region
          %s147 = smul.u32 4, %s26
          %149 = vsyncadd [#allocation7], 0
          %s150 = smul.addr %s147, 8
          %s151 = scalar_lea.hbm %s1, %s150
          %s152 = sshll.u32 %s151, 4
          %s153 = int_to_ptr.hbm [resolvable:$true] %s152
          %s154 = sshll.u32 [#allocation6], 4
          %s155 = int_to_ptr.vmem [resolvable:$true] %s154
          %160 = dma.hbm_to_vmem [thread:$0]  %s153, 512, %s155, [#allocation7], 128, 128, 8
        $region16: #{tpu_custom_call.1} parent=11 // pred_fallthru
          _
        // Predicated region
        $region17: #{tpu_custom_call.1} parent=11 // pred_check
          %p161 = pneg %p103
        $region18: #{tpu_custom_call.1} parent=11 // pred_check_branch
          %163 = sbr.rel (%p161) target = $region20
        $region19: #{tpu_custom_call.1} parent=11 // pred_region
          _
        $region20: #{tpu_custom_call.1} parent=11 // pred_fallthru
          _
      $region12: #{tpu_custom_call.1} parent=5 // pred_fallthru
        _
      %p164 = scmp.lt.s32.totalorder %s16, 2
      // Predicated region
      $region21: #{tpu_custom_call.1} parent=5 // pred_check
        %p165 = pneg %p164
      $region22: #{tpu_custom_call.1} parent=5 // pred_check_branch
        %167 = sbr.rel (%p165) target = $region24
      $region23: #{tpu_custom_call.1} parent=5 // pred_region
        // Predicated region
        $region25: #{tpu_custom_call.1} parent=23 // pred_check
          %p168 = pneg %p50
        $region26: #{tpu_custom_call.1} parent=23 // pred_check_branch
          %170 = sbr.rel (%p168) target = $region28
        $region27: #{tpu_custom_call.1} parent=23 // pred_region
          %s171 = sand.u32 %s40, 1
          %s172 = scalar_lea.sflag [#allocation4], %s171
          %s173 = sand.u32 %s40, 1
          %s174 = smul.addr %s173, 8
          %s175 = scalar_lea.vmem [#allocation3], %s174
          %177 = vsyncadd %s172, 0
          %s178 = sadd.s32 %s24, %s23
          %s179 = smul.addr %s178, 8
          %s180 = scalar_lea.hbm %s0, %s179
          %s182 = sshll.u32 %s180, 4
          %s183 = int_to_ptr.hbm [resolvable:$true] %s182
          %s184 = sshll.u32 %s175, 4
          %s185 = int_to_ptr.vmem [resolvable:$true] %s184
          %187 = dma.hbm_to_vmem [thread:$0]  %s183, 128, %s185, %s172
        $region28: #{tpu_custom_call.1} parent=23 // pred_fallthru
          _
      $region24: #{tpu_custom_call.1} parent=5 // pred_fallthru
        _
      %p188 = scmp.le.s32.totalorder 1, %s16
      %p189 = scmp.lt.s32.totalorder %s16, 3
      %p190 = pnand %p188, %p189
      %p191 = pneg %p190
      // Predicated region
      $region29: #{tpu_custom_call.1} parent=5 // pred_check
        _
      $region30: #{tpu_custom_call.1} parent=5 // pred_check_branch
        %193 = sbr.rel (%p190) target = $region32
      $region31: #{tpu_custom_call.1} parent=5 // pred_region
        %s194 = ssub.s32 %s16, 1
        %s195 = sand.u32 %s43, 1
        %s196 = scalar_lea.sflag [#allocation4], %s195
        %s197 = sand.u32 %s43, 1
        %s198 = smul.addr %s197, 8
        %s199 = scalar_lea.vmem [#allocation3], %s198
        // Predicated region
        $region33: #{tpu_custom_call.1} parent=31 // pred_check
          %p200 = pneg %p56
        $region34: #{tpu_custom_call.1} parent=31 // pred_check_branch
          %202 = sbr.rel (%p200) target = $region36
        $region35: #{tpu_custom_call.1} parent=31 // pred_region
          %204 = dma.done %s196, 128
        $region36: #{tpu_custom_call.1} parent=31 // pred_fallthru
          _
        // Predicated region
        $region37: #{tpu_custom_call.1} parent=31 // pred_check
          %p205 = pneg %p82
        $region38: #{tpu_custom_call.1} parent=31 // pred_check_branch
          %207 = sbr.rel (%p205) target = $region40
        $region39: #{tpu_custom_call.1} parent=31 // pred_region
          %209 = dma.done [#allocation7], 512
        $region40: #{tpu_custom_call.1} parent=31 // pred_fallthru
          _
        %s210 = sand.u32 %s43, 1
        %s211 = scalar_lea.sflag [#allocation4], %s210
        %s212 = sand.u32 %s43, 1
        %s213 = smul.addr %s212, 8
        %s214 = scalar_lea.vmem [#allocation3], %s213
        %p215 = pneg %p56
        %p216 = pneg %p53
        %p217 = pneg %p82
        %p218 = pneg %p79
        %p219 = pneg %p103
        %p220 = pneg %p100
        %p221 = pneg %p129
        %p222 = pneg %p126
        %s223 = sand.u32 %s116, 1
        %s224 = scalar_lea.sflag [#allocation5], %s223
        %s225 = sand.u32 %s116, 1
        %s226 = smul.addr %s225, 8
        %s227 = scalar_lea.vmem [#allocation8], %s226
        %s228 = smul.u32 4, %s26
        %p229 = scmp.eq.s32.totalorder %s26, 0
        // Predicated region
        $region41: #{tpu_custom_call.1} parent=31 // pred_check
          %p230 = pneg %p229
        $region42: #{tpu_custom_call.1} parent=31 // pred_check_branch
          %232 = sbr.rel (%p230) target = $region44
        $region43: #{tpu_custom_call.1} parent=31 // pred_region
          %233 = vst [vmem:[#allocation2] sm:$0xff] 0.0
        $region44: #{tpu_custom_call.1} parent=31 // pred_fallthru
          _
        %v234 = vld [vmem:[#allocation2] sm:$0xff]
        %v235 = vld [vmem:[%s199] sm:$0xff]
        %v236 = vld [vmem:[#allocation6] sm:$0xff]
        %v237 = vld [vmem:[#allocation6 + $0x8] sm:$0xff]
        %v238 = vld [vmem:[#allocation6 + $0x10] sm:$0xff]
        %v239 = vld [vmem:[#allocation6 + $0x18] sm:$0xff]
        %vm240 = vcmask 261120
        %v242 = vsel %vm240, %v235, 0
        %244 = vmatpush.msra.mxu0 0.0
        %245 = vmatpush.msra.mxu0 0.0
        %246 = vmatpush.msra.mxu0 0.0
        %247 = vmatpush.msra.mxu0 0.0
        %248 = vmatpush.msra.mxu0 0.0
        %249 = vmatpush.msra.mxu0 0.0
        %250 = vmatpush.msra.mxu0 0.0
        %251 = vmatpush.msra.mxu0 0.0
        %252 = vmatpush.msra.mxu0 0.0
        %253 = vmatpush.msra.mxu0 0.0
        %254 = vmatpush.msra.mxu0 0.0
        %255 = vmatpush.msra.mxu0 0.0
        %256 = vmatpush.msra.mxu0 %v239
        %257 = vmatpush.msra.mxu0 %v238
        %258 = vmatpush.msra.mxu0 %v237
        %259 = vmatpush.msra.mxu0 %v236
        %260 = vmatmul.f32.gmra.mxu0 %v242
        %v261 = vpop.f32.mrf.mxu0
        %v262 = vadd.f32 0.0, %v261
        %263 = vdwg.mxu0
        %v264 = vadd.f32 %v234, %v262
        %265 = vst [vmem:[#allocation2] sm:$0xff] %v264
        // Predicated region
        $region45: #{tpu_custom_call.1} parent=31 // pred_check
          %p266 = pneg %p229
        $region46: #{tpu_custom_call.1} parent=31 // pred_check_branch
          %268 = sbr.rel (%p266) target = $region48
        $region47: #{tpu_custom_call.1} parent=31 // pred_region
          %v269 = vld [vmem:[#allocation2] sm:$0xff]
          %v270 = vld [vmem:[%s2] sm:$0x1]
          %v272 = vperm.slane %v270, 0
          %v274 = vadd.f32 %v269, %v272
          %275 = vmax.xlane.f32.xlu0 %v274
          %v276 = vpop.xlane.xlu0 %275
          %v277 = vsub.f32 %v274, %v276
          %v278 = vmul.f32 %v277, 1.442695
          %v279 = vpow.pop %v278
          %280 = vadd.xlane.f32.xlu0 %v279
          %v281 = vpop.xlane.xlu0 %280
          %v282 = vlog2.pop %v281
          %v283 = vmul.f32 %v282, 0.6931472
          %v284 = vadd.f32 %v276, %v283
          %v285 = vsub.f32 %v274, %v284
          %286 = vst [vmem:[%s227] sm:$0xff] %v285
        $region48: #{tpu_custom_call.1} parent=31 // pred_fallthru
          _
        %s287 = sand.u32 %s116, 1
        %s288 = scalar_lea.sflag [#allocation5], %s287
        %s289 = sand.u32 %s116, 1
        %s290 = smul.addr %s289, 8
        %s291 = scalar_lea.vmem [#allocation8], %s290
        // Predicated region
        $region49: #{tpu_custom_call.1} parent=31 // pred_check
          %p292 = pneg %p126
        $region50: #{tpu_custom_call.1} parent=31 // pred_check_branch
          %294 = sbr.rel (%p292) target = $region52
        $region51: #{tpu_custom_call.1} parent=31 // pred_region
          %296 = vsyncadd %s288, 0
          %s297 = smul.addr %s25, 8
          %s298 = scalar_lea.hbm %s3, %s297
          %s300 = sshll.u32 %s291, 4
          %s301 = int_to_ptr.vmem [resolvable:$true] %s300
          %s302 = sshll.u32 %s298, 4
          %s303 = int_to_ptr.hbm [resolvable:$true] %s302
          %305 = dma.vmem_to_hbm [thread:$0]  %s301, 128, %s303, %s288
        $region52: #{tpu_custom_call.1} parent=31 // pred_fallthru
          _
      $region32: #{tpu_custom_call.1} parent=5 // pred_fallthru
        _
      %p306 = scmp.le.s32.totalorder 2, %s16
      // Predicated region
      $region53: #{tpu_custom_call.1} parent=5 // pred_check
        %p307 = pneg %p306
      $region54: #{tpu_custom_call.1} parent=5 // pred_check_branch
        %309 = sbr.rel (%p307) target = $region56
      $region55: #{tpu_custom_call.1} parent=5 // pred_region
        %s310 = ssub.s32 %s16, 2
        // Predicated region
        $region57: #{tpu_custom_call.1} parent=55 // pred_check
          %p311 = pneg %p132
        $region58: #{tpu_custom_call.1} parent=55 // pred_check_branch
          %313 = sbr.rel (%p311) target = $region60
        $region59: #{tpu_custom_call.1} parent=55 // pred_region
          %s314 = sand.u32 %s117, 1
          %s315 = scalar_lea.sflag [#allocation5], %s314
          %s316 = sand.u32 %s117, 1
          %s317 = smul.addr %s316, 8
          %s318 = scalar_lea.vmem [#allocation8], %s317
          %320 = dma.done %s315, 128
        $region60: #{tpu_custom_call.1} parent=55 // pred_fallthru
          _
      $region56: #{tpu_custom_call.1} parent=5 // pred_fallthru
        _
    $region6: #{tpu_custom_call.1} parent=1 // loop_footer
      %s20 = sadd.s32 1, %s16
    $region7: #{tpu_custom_call.1} parent=1 // loop_footer_branch
      %15 = sbr.rel target = $region3
    $region8: #{tpu_custom_call.1} parent=1 // loop_exit
      _
    %321 = vsyncpa [#allocation4], 1
    %s322 = scalar_lea.sflag [#allocation4], 1
    %323 = vsyncpa %s322, 1
    %324 = vsyncpa [#allocation7], 1
    %325 = vsyncpa [#allocation5], 1
    %s326 = scalar_lea.sflag [#allocation5], 1
    %327 = vsyncpa %s326, 1

</llo_original>
